<compile_context>
chip_gen: v7x
topology: tpu7x:2x2x1
jax: 0.10.0
libtpu: 0.0.40
codegen_flags: <defaults>
</compile_context>

<pallas_src>
import jax
import jax.numpy as jnp
from jax.experimental import pallas as pl
from jax.experimental.pallas import tpu as pltpu


def _round_up(x, m):
    return ((x + m - 1) // m) * m


def _body_rotation_kernel(sc_tok_ref, tok_ref, jimg_ref,
                          w_sc_ref, b_sc_ref,
                          w_tok_ref, w_jimg_ref, b_head_ref,
                          sc_out_ref, head_out_ref):
    # ---- shape & cam heads: ONE MXU pass over 2*blk interleaved token rows --
    sc = jnp.dot(sc_tok_ref[...], w_sc_ref[...],
                 preferred_element_type=jnp.float32)
    sc_out_ref[...] = (sc + b_sc_ref[...]).astype(sc_out_ref.dtype)

    # ---- fused (body_conv o root|body head) + joint-img head ---------------
    # Two large matmuls, f32 accumulation, f32 bias add, cast at the store.
    acc = jnp.dot(tok_ref[...], w_tok_ref[...],
                  preferred_element_type=jnp.float32)
    acc = acc + jnp.dot(jimg_ref[...], w_jimg_ref[...],
                        preferred_element_type=jnp.float32)
    acc = acc + b_head_ref[...]
    head_out_ref[...] = acc.astype(head_out_ref.dtype)


def prepare_body_rotation_params(w_conv, b_conv, w_root, b_root,
                                 w_body, b_body, w_shape, b_shape,
                                 w_cam, b_cam, joint_num,
                                 compute_dtype=jnp.bfloat16):
    """Fuse / pad / cast the weights ONCE per model (hoisted off the forward).

    Weights use the (in_dim, out_dim) convention, y = x @ W + b, which equals
    PyTorch's x @ W_torch.T + b.
    """
    J = joint_num
    F, H = w_conv.shape
    S, C = w_shape.shape[1], w_cam.shape[1]
    R, P = w_root.shape[1], w_body.shape[1]
    SC, RP = S + C, R + P
    SCp, RPp = _round_up(SC, 128), _round_up(RP, 128)
    f32 = jnp.float32

    # shape|cam heads fused column-wise, lane-padded to SCp.
    w_sc = jnp.concatenate([w_shape, w_cam], axis=1).astype(f32)
    w_sc = jnp.pad(w_sc, ((0, 0), (0, SCp - SC)))
    b_sc = jnp.pad(jnp.concatenate([b_shape, b_cam]).astype(f32),
                   (0, SCp - SC)).reshape(1, SCp)

    # root|body heads fused column-wise; split rows by origin (per-joint conv
    # features vs per-joint joint_img), matching the cat+view(B,-1) interleave.
    w_head = jnp.concatenate([w_root, w_body], axis=1).astype(f32)
    w_head = w_head.reshape(J, H + 3, RP)
    w_head_conv = w_head[:, :H, :]                     # (J, H, RP)
    w_head_img = w_head[:, H:, :].reshape(J * 3, RP)   # (J*3, RP)
    b_head = jnp.concatenate([b_root, b_body]).astype(f32)

    # Fold the purely-linear body_conv into the head weights (exact algebra):
    #   conv_j = tok_j @ w_conv + b_conv
    #   head   = sum_j conv_j @ Wc_j + jimg @ Wi + b_head
    #          = tok_flat @ [w_conv @ Wc_j]_j + jimg @ Wi
    #            + (b_head + b_conv @ sum_j Wc_j)
    w_tok = jnp.einsum('fh,jho->jfo', w_conv.astype(f32), w_head_conv)
    w_tok = w_tok.reshape(J * F, RP)
    b_fused = b_head + jnp.einsum('h,jho->o', b_conv.astype(f32), w_head_conv)

    # Lane-pad and cast the matmul weights; keep biases in f32.
    w_tok = jnp.pad(w_tok, ((0, 0), (0, RPp - RP))).astype(compute_dtype)
    w_jimg = jnp.pad(w_head_img, ((0, 0), (0, RPp - RP))).astype(compute_dtype)
    b_fused = jnp.pad(b_fused, (0, RPp - RP)).reshape(1, RPp)
    w_sc = w_sc.astype(compute_dtype)

    params = dict(w_sc=w_sc, b_sc=b_sc, w_tok=w_tok, w_jimg=w_jimg,
                  b_head=b_fused)
    dims = dict(J=J, F=F, H=H, S=S, C=C, R=R, P=P, SCp=SCp, RPp=RPp)
    return params, dims


def body_rotation_net_forward(body_pose_token, shape_token, cam_token,
                              body_joint_img, params, dims):
    """Returns (root_pose, body_pose, shape_param, cam_param)."""
    B, J, F = body_pose_token.shape
    assert J == dims['J'] and F == dims['F']
    S, C, R, P = dims['S'], dims['C'], dims['R'], dims['P']
    SCp, RPp = dims['SCp'], dims['RPp']
    compute_dtype = params['w_tok'].dtype
    out_dtype = body_pose_token.dtype
    cbytes = jnp.dtype(compute_dtype).itemsize

    # Batch tile: sublane-packing aligned (16 rows for bf16), capped at 128 so
    # the working set fits v7x's 64 MiB VMEM and large batches get >= 2 grid
    # steps for megacore; tiny batches stay a single step (don't split and
    # re-read the weights on both cores).
    sub = 16 if cbytes == 2 else 8
    blk = min(_round_up(B, sub), 128)
    Bp = _round_up(B, blk)
    grid = (Bp // blk,)

    def pad_b(x):
        return jnp.pad(x, ((0, Bp - B),) + ((0, 0),) * (x.ndim - 1))

    # Free, contiguous reshapes (no transpose): tokens flattened per batch row;
    # shape/cam tokens interleaved row-wise -> one (2*blk, F) block per step.
    tok = pad_b(body_pose_token).reshape(Bp, J * F).astype(compute_dtype)
    jimg = pad_b(body_joint_img).reshape(Bp, J * 3).astype(compute_dtype)
    sc_tok = jnp.stack([pad_b(shape_token), pad_b(cam_token)],
                       axis=1).reshape(2 * Bp, F).astype(compute_dtype)

    # VMEM budget: every block is double-buffered by Pallas; estimate the
    # padded tile bytes and clamp the scoped limit to [32 MiB, 64 MiB]
    # (64 MiB = v7x physical VMEM; v5e/v6e have 128 MiB).
    def tile_bytes(r, c, dt):
        it = jnp.dtype(dt).itemsize
        return (_round_up(max(r, 1), 16 if it == 2 else 8)
                * _round_up(max(c, 1), 128) * it)

    working = 2 * (tile_bytes(2 * blk, F, compute_dtype)
                   + tile_bytes(blk, J * F, compute_dtype)
                   + tile_bytes(blk, J * 3, compute_dtype)
                   + tile_bytes(F, SCp, compute_dtype)
                   + tile_bytes(1, SCp, jnp.float32)
                   + tile_bytes(J * F, RPp, compute_dtype)
                   + tile_bytes(J * 3, RPp, compute_dtype)
                   + tile_bytes(1, RPp, jnp.float32)
                   + tile_bytes(2 * blk, SCp, out_dtype)
                   + tile_bytes(blk, RPp, out_dtype))
    vmem_limit = int(min(max(working * 3 // 2, 32 << 20), 64 << 20))

    operands = (sc_tok, tok, jimg, params['w_sc'], params['b_sc'],
                params['w_tok'], params['w_jimg'], params['b_head'])
    flops = 2 * Bp * (2 * F * SCp + (J * F) * RPp + (J * 3) * RPp)
    bytes_accessed = int(sum(int(x.size) * x.dtype.itemsize for x in operands)
                         + (2 * Bp * SCp + Bp * RPp)
                         * jnp.dtype(out_dtype).itemsize)

    # TODO(synk): pipeline_mode=pl.Buffered(1) on the constant-index weight
    # specs would halve their resident VMEM (worth enabling on v7x).
    sc_out, head_out = pl.pallas_call(
        _body_rotation_kernel,
        out_shape=(
            jax.ShapeDtypeStruct((2 * Bp, SCp), out_dtype),  # [shape;cam] rows
            jax.ShapeDtypeStruct((Bp, RPp), out_dtype),      # [root | body]
        ),
        grid=grid,
        in_specs=[
            pl.BlockSpec((2 * blk, F), lambda i: (i, 0)),    # interleaved sc tok
            pl.BlockSpec((blk, J * F), lambda i: (i, 0)),    # body tokens (flat)
            pl.BlockSpec((blk, J * 3), lambda i: (i, 0)),    # joint img (flat)
            pl.BlockSpec((F, SCp), lambda i: (0, 0)),        # w_sc
            pl.BlockSpec((1, SCp), lambda i: (0, 0)),        # b_sc (f32)
            pl.BlockSpec((J * F, RPp), lambda i: (0, 0)),    # fused token head
            pl.BlockSpec((J * 3, RPp), lambda i: (0, 0)),    # joint-img head
            pl.BlockSpec((1, RPp), lambda i: (0, 0)),        # fused bias (f32)
        ],
        out_specs=(
            pl.BlockSpec((2 * blk, SCp), lambda i: (i, 0)),
            pl.BlockSpec((blk, RPp), lambda i: (i, 0)),
        ),
        compiler_params=pltpu.CompilerParams(
            dimension_semantics=("parallel",),
            vmem_limit_bytes=vmem_limit),
        cost_estimate=pl.CostEstimate(flops=int(flops), transcendentals=0,
                                      bytes_accessed=bytes_accessed),
    )(*operands)

    # Slice the real rows/columns out of the padded, lane-dense slabs.
    shape_param = sc_out[0:2 * B:2, :S]
    cam_param = sc_out[1:2 * B:2, S:S + C]
    root_pose = head_out[:B, :R]
    body_pose = head_out[:B, R:R + P]
    return root_pose, body_pose, shape_param, cam_param


def body_rotation_net(body_pose_token, shape_token, cam_token, body_joint_img,
                      w_conv, b_conv, w_root, b_root, w_body, b_body,
                      w_shape, b_shape, w_cam, b_cam,
                      compute_dtype=jnp.float32):
    """Convenience all-in-one wrapper (production code should hoist prepare)."""
    params, dims = prepare_body_rotation_params(
        w_conv, b_conv, w_root, b_root, w_body, b_body,
        w_shape, b_shape, w_cam, b_cam,
        joint_num=body_pose_token.shape[1], compute_dtype=compute_dtype)
    return body_rotation_net_forward(body_pose_token, shape_token, cam_token,
                                     body_joint_img, params, dims)


if __name__ == "__main__":
    # Small shapes consistent with the module (feat_dim/hidden/joints scaled).
    B = 2            # batch
    J = 4            # joint_num (scaled down from SMPL-X body joints)
    FEAT_DIM = 32    # feat_dim (module default 768)
    HIDDEN = 128     # body_conv hidden width (module uses 512)
    SHAPE_DIM = 10   # smpl_x.shape_param_dim
    CAM_DIM = 3
    ROOT_DIM = 6
    BODY_DIM = 12    # (len(orig body joints) - 1) * 6, scaled down

    key = jax.random.PRNGKey(0)
    ks = jax.random.split(key, 14)

    body_pose_token = jax.random.normal(ks[0], (B, J, FEAT_DIM), jnp.float32)
    shape_token = jax.random.normal(ks[1], (B, FEAT_DIM), jnp.float32)
    cam_token = jax.random.normal(ks[2], (B, FEAT_DIM), jnp.float32)
    body_joint_img = jax.random.normal(ks[3], (B, J, 3), jnp.float32)

    s = 0.02  # nn.Linear-like init scale
    w_conv = jax.random.normal(ks[4], (FEAT_DIM, HIDDEN), jnp.float32) * s
    b_conv = jax.random.normal(ks[5], (HIDDEN,), jnp.float32) * s
    w_root = jax.random.normal(ks[6], (J * (HIDDEN + 3), ROOT_DIM), jnp.float32) * s
    b_root = jax.random.normal(ks[7], (ROOT_DIM,), jnp.float32) * s
    w_body = jax.random.normal(ks[8], (J * (HIDDEN + 3), BODY_DIM), jnp.float32) * s
    b_body = jax.random.normal(ks[9], (BODY_DIM,), jnp.float32) * s
    w_shape = jax.random.normal(ks[10], (FEAT_DIM, SHAPE_DIM), jnp.float32) * s
    b_shape = jax.random.normal(ks[11], (SHAPE_DIM,), jnp.float32) * s
    w_cam = jax.random.normal(ks[12], (FEAT_DIM, CAM_DIM), jnp.float32) * s
    b_cam = jax.random.normal(ks[13], (CAM_DIM,), jnp.float32) * s

    # Pure-JAX reference, same math as the PyTorch module's forward.
    hp = jax.lax.Precision.HIGHEST
    conv = jnp.einsum('bjf,fh->bjh', body_pose_token, w_conv, precision=hp) + b_conv
    flat = jnp.concatenate([conv, body_joint_img], axis=2).reshape(B, -1)
    root_ref = jnp.dot(flat, w_root, precision=hp) + b_root
    body_ref = jnp.dot(flat, w_body, precision=hp) + b_body
    shape_ref = jnp.dot(shape_token, w_shape, precision=hp) + b_shape
    cam_ref = jnp.dot(cam_token, w_cam, precision=hp) + b_cam

    weights = (w_conv, b_conv, w_root, b_root, w_body, b_body,
               w_shape, b_shape, w_cam, b_cam)

    # ---- f32 weight/token path: tight correctness check --------------------
    params32, dims32 = prepare_body_rotation_params(
        *weights, joint_num=J, compute_dtype=jnp.float32)
    out32 = body_rotation_net_forward(body_pose_token, shape_token, cam_token,
                                      body_joint_img, params32, dims32)
    jax.block_until_ready(out32)
    root32, body32, shape32, cam32 = out32
    assert root32.shape == (B, ROOT_DIM)
    assert body32.shape == (B, BODY_DIM)
    assert shape32.shape == (B, SHAPE_DIM)
    assert cam32.shape == (B, CAM_DIM)
    assert jnp.allclose(root32, root_ref, atol=5e-3)
    assert jnp.allclose(body32, body_ref, atol=5e-3)
    assert jnp.allclose(shape32, shape_ref, atol=5e-3)
    assert jnp.allclose(cam32, cam_ref, atol=5e-3)

    # ---- bf16 weight/token DMA path (f32 MXU accumulation): production -----
    params16, dims16 = prepare_body_rotation_params(
        *weights, joint_num=J, compute_dtype=jnp.bfloat16)
    out16 = body_rotation_net_forward(body_pose_token, shape_token, cam_token,
                                      body_joint_img, params16, dims16)
    jax.block_until_ready(out16)
    root16, body16, shape16, cam16 = out16
    assert jnp.allclose(root16, root_ref, atol=3e-2)
    assert jnp.allclose(body16, body_ref, atol=3e-2)
    assert jnp.allclose(shape16, shape_ref, atol=3e-2)
    assert jnp.allclose(cam16, cam_ref, atol=3e-2)

    print("KERNEL_OK")
</pallas_src>

<mosaic_0001>
module attributes {stable_mosaic.version = 11 : i64} {
  func.func @_body_rotation_kernel(%arg0: i32, %arg1: memref<16x32xf32, #tpu.memory_space<vmem>>, %arg2: memref<8x128xf32, #tpu.memory_space<vmem>>, %arg3: memref<8x12xf32, #tpu.memory_space<vmem>>, %arg4: memref<32x128xf32, #tpu.memory_space<vmem>>, %arg5: memref<1x128xf32, #tpu.memory_space<vmem>>, %arg6: memref<128x128xf32, #tpu.memory_space<vmem>>, %arg7: memref<12x128xf32, #tpu.memory_space<vmem>>, %arg8: memref<1x128xf32, #tpu.memory_space<vmem>>, %arg9: memref<16x128xf32, #tpu.memory_space<vmem>>, %arg10: memref<8x128xf32, #tpu.memory_space<vmem>>) attributes {dimension_semantics = [#tpu.dimension_semantics<parallel>], iteration_bounds = array<i64: 1>, scalar_prefetch = 0 : i64, scratch_operands = 0 : i64, tpu.core_type = #tpu.core_type<tc>, window_params = [{transform_indices = @transform_0, window_bounds = array<i64: 16, 32>}, {transform_indices = @transform_1, window_bounds = array<i64: 8, 128>}, {transform_indices = @transform_2, window_bounds = array<i64: 8, 12>}, {pipeline_mode = #tpu.pipeline_mode<synchronous>, transform_indices = @transform_3, window_bounds = array<i64: 32, 128>}, {pipeline_mode = #tpu.pipeline_mode<synchronous>, transform_indices = @transform_4, window_bounds = array<i64: 1, 128>}, {pipeline_mode = #tpu.pipeline_mode<synchronous>, transform_indices = @transform_5, window_bounds = array<i64: 128, 128>}, {pipeline_mode = #tpu.pipeline_mode<synchronous>, transform_indices = @transform_6, window_bounds = array<i64: 12, 128>}, {pipeline_mode = #tpu.pipeline_mode<synchronous>, transform_indices = @transform_7, window_bounds = array<i64: 1, 128>}, {transform_indices = @transform_8, window_bounds = array<i64: 16, 128>}, {transform_indices = @transform_9, window_bounds = array<i64: 8, 128>}]} {
    %c0 = arith.constant 0 : index
    %c0_0 = arith.constant 0 : index
    %0 = vector.load %arg1[%c0, %c0_0] : memref<16x32xf32, #tpu.memory_space<vmem>>, vector<16x32xf32>
    %c0_1 = arith.constant 0 : index
    %c0_2 = arith.constant 0 : index
    %1 = vector.load %arg4[%c0_1, %c0_2] : memref<32x128xf32, #tpu.memory_space<vmem>>, vector<32x128xf32>
    %cst = arith.constant dense<0.000000e+00> : vector<16x128xf32>
    %2 = tpu.matmul %0, %1, %cst {dimension_numbers = #tpu.dot_dimension_numbers<[1], [0], [0], [1], [0, 0, 1, 1], [], []>} : vector<16x32xf32>, vector<32x128xf32>, vector<16x128xf32> -> vector<16x128xf32>
    %c0_3 = arith.constant 0 : index
    %c0_4 = arith.constant 0 : index
    %3 = vector.load %arg5[%c0_3, %c0_4] : memref<1x128xf32, #tpu.memory_space<vmem>>, vector<1x128xf32>
    %4 = vector.broadcast %3 : vector<1x128xf32> to vector<16x128xf32>
    %5 = arith.addf %2, %4 : vector<16x128xf32>
    %c0_5 = arith.constant 0 : index
    %c0_6 = arith.constant 0 : index
    %6 = vector.load %arg9[%c0_5, %c0_6] : memref<16x128xf32, #tpu.memory_space<vmem>>, vector<16x128xf32>
    tpu.vector_store %arg9[%c0_5, %c0_6], %5 {strides = array<i32>} : memref<16x128xf32, #tpu.memory_space<vmem>>, vector<16x128xf32>,
    %c0_7 = arith.constant 0 : index
    %c0_8 = arith.constant 0 : index
    %7 = vector.load %arg2[%c0_7, %c0_8] : memref<8x128xf32, #tpu.memory_space<vmem>>, vector<8x128xf32>
    %c0_9 = arith.constant 0 : index
    %c0_10 = arith.constant 0 : index
    %8 = vector.load %arg6[%c0_9, %c0_10] : memref<128x128xf32, #tpu.memory_space<vmem>>, vector<128x128xf32>
    %cst_11 = arith.constant dense<0.000000e+00> : vector<8x128xf32>
    %9 = tpu.matmul %7, %8, %cst_11 {dimension_numbers = #tpu.dot_dimension_numbers<[1], [0], [0], [1], [0, 0, 1, 1], [], []>} : vector<8x128xf32>, vector<128x128xf32>, vector<8x128xf32> -> vector<8x128xf32>
    %c0_12 = arith.constant 0 : index
    %c0_13 = arith.constant 0 : index
    %10 = vector.load %arg3[%c0_12, %c0_13] : memref<8x12xf32, #tpu.memory_space<vmem>>, vector<8x12xf32>
    %c0_14 = arith.constant 0 : index
    %c0_15 = arith.constant 0 : index
    %11 = vector.load %arg7[%c0_14, %c0_15] : memref<12x128xf32, #tpu.memory_space<vmem>>, vector<12x128xf32>
    %cst_16 = arith.constant dense<0.000000e+00> : vector<8x128xf32>
    %12 = tpu.matmul %10, %11, %cst_16 {dimension_numbers = #tpu.dot_dimension_numbers<[1], [0], [0], [1], [0, 0, 1, 1], [], []>} : vector<8x12xf32>, vector<12x128xf32>, vector<8x128xf32> -> vector<8x128xf32>
    %13 = arith.addf %9, %12 : vector<8x128xf32>
    %c0_17 = arith.constant 0 : index
    %c0_18 = arith.constant 0 : index
    %14 = vector.load %arg8[%c0_17, %c0_18] : memref<1x128xf32, #tpu.memory_space<vmem>>, vector<1x128xf32>
    %15 = vector.broadcast %14 : vector<1x128xf32> to vector<8x128xf32>
    %16 = arith.addf %13, %15 : vector<8x128xf32>
    %c0_19 = arith.constant 0 : index
    %c0_20 = arith.constant 0 : index
    %17 = vector.load %arg10[%c0_19, %c0_20] : memref<8x128xf32, #tpu.memory_space<vmem>>, vector<8x128xf32>
    tpu.vector_store %arg10[%c0_19, %c0_20], %16 {strides = array<i32>} : memref<8x128xf32, #tpu.memory_space<vmem>>, vector<8x128xf32>,
    return
  }
  func.func @transform_0(%arg0: i32) -> (i32, i32) {
    %c0_i32 = arith.constant 0 : i32
    %c0_i32_0 = arith.constant 0 : i32
    return %arg0, %c0_i32 : i32, i32
  }
  func.func @transform_1(%arg0: i32) -> (i32, i32) {
    %c0_i32 = arith.constant 0 : i32
    %c0_i32_0 = arith.constant 0 : i32
    return %arg0, %c0_i32 : i32, i32
  }
  func.func @transform_2(%arg0: i32) -> (i32, i32) {
    %c0_i32 = arith.constant 0 : i32
    %c0_i32_0 = arith.constant 0 : i32
    return %arg0, %c0_i32 : i32, i32
  }
  func.func @transform_3(%arg0: i32) -> (i32, i32) {
    %c0_i32 = arith.constant 0 : i32
    %c0_i32_0 = arith.constant 0 : i32
    %c0_i32_1 = arith.constant 0 : i32
    return %c0_i32, %c0_i32_0 : i32, i32
  }
  func.func @transform_4(%arg0: i32) -> (i32, i32) {
    %c0_i32 = arith.constant 0 : i32
    %c0_i32_0 = arith.constant 0 : i32
    %c0_i32_1 = arith.constant 0 : i32
    return %c0_i32, %c0_i32_0 : i32, i32
  }
  func.func @transform_5(%arg0: i32) -> (i32, i32) {
    %c0_i32 = arith.constant 0 : i32
    %c0_i32_0 = arith.constant 0 : i32
    %c0_i32_1 = arith.constant 0 : i32
    return %c0_i32, %c0_i32_0 : i32, i32
  }
  func.func @transform_6(%arg0: i32) -> (i32, i32) {
    %c0_i32 = arith.constant 0 : i32
    %c0_i32_0 = arith.constant 0 : i32
    %c0_i32_1 = arith.constant 0 : i32
    return %c0_i32, %c0_i32_0 : i32, i32
  }
  func.func @transform_7(%arg0: i32) -> (i32, i32) {
    %c0_i32 = arith.constant 0 : i32
    %c0_i32_0 = arith.constant 0 : i32
    %c0_i32_1 = arith.constant 0 : i32
    return %c0_i32, %c0_i32_0 : i32, i32
  }
  func.func @transform_8(%arg0: i32) -> (i32, i32) {
    %c0_i32 = arith.constant 0 : i32
    %c0_i32_0 = arith.constant 0 : i32
    return %arg0, %c0_i32 : i32, i32
  }
  func.func @transform_9(%arg0: i32) -> (i32, i32) {
    %c0_i32 = arith.constant 0 : i32
    %c0_i32_0 = arith.constant 0 : i32
    return %arg0, %c0_i32 : i32, i32
  }
}

</mosaic_0001>

<llo_original>
// kernel: tpu_custom_call.1
$region0: #{tpu_custom_call.1}
  #allocation0 [shape = 'u32[]', space=smem, size = 0x4, offset = 0x4, fixed_abs, tag = 'smem constant byte address 0x4 - core index']
  #allocation1 [shape = 'u32[144,128]{1,0:T(1,128)}', space=vmem, size = 0x12000, scoped, tag = 'internal scratch']
  %s0 = inlined_call_operand.hbm [shape: f32[16,32], index: 0, kind: input, shape index: {}]
  %s1 = inlined_call_operand.hbm [shape: f32[8,128], index: 1, kind: input, shape index: {}]
  %s2 = inlined_call_operand.hbm [shape: f32[8,12], index: 2, kind: input, shape index: {}]
  %s3 = inlined_call_operand.hbm [shape: f32[32,128], index: 3, kind: input, shape index: {}]
  %s4 = inlined_call_operand.vmem [shape: f32[1,128], index: 4, kind: input, shape index: {}]
  %s5 = inlined_call_operand.hbm [shape: f32[128,128], index: 5, kind: input, shape index: {}]
  %s6 = inlined_call_operand.vmem [shape: f32[12,128], index: 6, kind: input, shape index: {}]
  %s7 = inlined_call_operand.vmem [shape: f32[1,128], index: 7, kind: input, shape index: {}]
  %s8 = inlined_call_operand.hbm [shape: f32[16,128], index: 8, kind: output, shape index: {0}]
  %s9 = inlined_call_operand.hbm [shape: f32[8,128], index: 9, kind: output, shape index: {1}]
  %10 = xla_tuple %s8, %s9
  %s11 = sld [smem:[#allocation0]]
  $region70: #{tpu_custom_call.1} parent=0
    _
  %s13 = ssub.s32 1, %s11
  %s14 = scalar_select 0, %s13, %s11
  $region1: #{tpu_custom_call.1} parent=0
    #allocation2 [shape = 'u8[8192]{0}', space=vmem, size = 0x2000, scoped, tag = 'input window, operand 0, single buffered']
    #allocation3 [shape = 's32[1]{0}', space=sflag, size = 0x4, scoped, tag = 'scoped memory for tpu_custom_call.1']
    #allocation4 [shape = 's32[1]{0}', space=sflag, size = 0x4, scoped, tag = 'scoped memory for tpu_custom_call.1']
    #allocation5 [shape = 'u8[4096]{0}', space=vmem, size = 0x1000, scoped, tag = 'input window, operand 1, single buffered']
    #allocation6 [shape = 's32[1]{0}', space=sflag, size = 0x4, scoped, tag = 'scoped memory for tpu_custom_call.1']
    #allocation7 [shape = 'u8[4096]{0}', space=vmem, size = 0x1000, scoped, tag = 'input window, operand 2, single buffered']
    #allocation8 [shape = 'u8[16384]{0}', space=vmem, size = 0x4000, scoped, tag = 'input window, operand 3, single buffered']
    #allocation9 [shape = 's32[1]{0}', space=sflag, size = 0x4, scoped, tag = 'scoped memory for tpu_custom_call.1']
    #allocation10 [shape = 'u8[65536]{0}', space=vmem, size = 0x10000, scoped, tag = 'input window, operand 5, single buffered']
    #allocation11 [shape = 'u8[8192]{0}', space=vmem, size = 0x2000, scoped, tag = 'output window, operand 0, single buffered']
    #allocation12 [shape = 'u8[4096]{0}', space=vmem, size = 0x1000, scoped, tag = 'output window, operand 1, single buffered']
    #allocation13 [shape = 's32[1]{0}', space=sflag, size = 0x4, scoped, tag = 'scoped memory for tpu_custom_call.1']
    %15 = vsyncpa [#allocation3], 0
    %16 = vsyncpa [#allocation6], 0
    %17 = vsyncpa [#allocation9], 0
    %18 = vsyncpa [#allocation4], 0
    %19 = vsyncpa [#allocation13], 0
    // Predicated region
    $region2: #{tpu_custom_call.1} parent=1 // pred_check
      _
    $region3: #{tpu_custom_call.1} parent=1 // pred_check_branch
      %21 = sbr.rel (0) target = $region5
    $region4: #{tpu_custom_call.1} parent=1 // pred_region
      %s23 = ssub.s32 256, 256
      %24 = vsyncadd [#allocation3], %s23
      %s25 = sshll.u32 [#allocation2], 4
      %s26 = int_to_ptr.vmem [resolvable:$true] %s25
      %31 = dma.hbm_to_vmem [thread:$0]  %s0, 256, %s26, [#allocation3], 128, 128, 8
    $region5: #{tpu_custom_call.1} parent=1 // pred_fallthru
      _
    // Predicated region
    $region6: #{tpu_custom_call.1} parent=1 // pred_check
      _
    $region7: #{tpu_custom_call.1} parent=1 // pred_check_branch
      %33 = sbr.rel (0) target = $region9
    $region8: #{tpu_custom_call.1} parent=1 // pred_region
      %s35 = ssub.s32 128, 128
      %36 = vsyncadd [#allocation6], %s35
      %s38 = sshll.u32 [#allocation5], 4
      %s39 = int_to_ptr.vmem [resolvable:$true] %s38
      %41 = dma.hbm_to_vmem [thread:$0]  %s1, 128, %s39, [#allocation6]
    $region9: #{tpu_custom_call.1} parent=1 // pred_fallthru
      _
    // Predicated region
    $region10: #{tpu_custom_call.1} parent=1 // pred_check
      _
    $region11: #{tpu_custom_call.1} parent=1 // pred_check_branch
      %43 = sbr.rel (0) target = $region13
    $region12: #{tpu_custom_call.1} parent=1 // pred_region
      %s45 = ssub.s32 128, 128
      %46 = vsyncadd [#allocation6], %s45
      %s48 = sshll.u32 [#allocation7], 4
      %s49 = int_to_ptr.vmem [resolvable:$true] %s48
      %51 = dma.hbm_to_vmem [thread:$0]  %s2, 128, %s49, [#allocation6]
    $region13: #{tpu_custom_call.1} parent=1 // pred_fallthru
      _
    // Predicated region
    $region14: #{tpu_custom_call.1} parent=1 // pred_check
      _
    $region15: #{tpu_custom_call.1} parent=1 // pred_check_branch
      %53 = sbr.rel (0) target = $region17
    $region16: #{tpu_custom_call.1} parent=1 // pred_region
      %s55 = ssub.s32 512, 512
      %56 = vsyncadd [#allocation9], %s55
      %s57 = sshll.u32 [#allocation8], 4
      %s58 = int_to_ptr.vmem [resolvable:$true] %s57
      %63 = dma.hbm_to_vmem [thread:$0]  %s3, 512, %s58, [#allocation9], 128, 128, 8
    $region17: #{tpu_custom_call.1} parent=1 // pred_fallthru
      _
    // Predicated region
    $region18: #{tpu_custom_call.1} parent=1 // pred_check
      _
    $region19: #{tpu_custom_call.1} parent=1 // pred_check_branch
      %65 = sbr.rel (0) target = $region21
    $region20: #{tpu_custom_call.1} parent=1 // pred_region
      _
    $region21: #{tpu_custom_call.1} parent=1 // pred_fallthru
      _
    // Predicated region
    $region22: #{tpu_custom_call.1} parent=1 // pred_check
      _
    $region23: #{tpu_custom_call.1} parent=1 // pred_check_branch
      %67 = sbr.rel (0) target = $region25
    $region24: #{tpu_custom_call.1} parent=1 // pred_region
      %s69 = ssub.s32 2048, 2048
      %70 = vsyncadd [#allocation9], %s69
      %s71 = sshll.u32 [#allocation10], 4
      %s72 = int_to_ptr.vmem [resolvable:$true] %s71
      %77 = dma.hbm_to_vmem [thread:$0]  %s5, 2048, %s72, [#allocation9], 128, 128, 8
    $region25: #{tpu_custom_call.1} parent=1 // pred_fallthru
      _
    // Predicated region
    $region26: #{tpu_custom_call.1} parent=1 // pred_check
      _
    $region27: #{tpu_custom_call.1} parent=1 // pred_check_branch
      %79 = sbr.rel (0) target = $region29
    $region28: #{tpu_custom_call.1} parent=1 // pred_region
      _
    $region29: #{tpu_custom_call.1} parent=1 // pred_fallthru
      _
    // Predicated region
    $region30: #{tpu_custom_call.1} parent=1 // pred_check
      _
    $region31: #{tpu_custom_call.1} parent=1 // pred_check_branch
      %81 = sbr.rel (0) target = $region33
    $region32: #{tpu_custom_call.1} parent=1 // pred_region
      _
    $region33: #{tpu_custom_call.1} parent=1 // pred_fallthru
      _
    // Predicated region
    $region34: #{tpu_custom_call.1} parent=1 // pred_check
      _
    $region35: #{tpu_custom_call.1} parent=1 // pred_check_branch
      %83 = sbr.rel (0) target = $region37
    $region36: #{tpu_custom_call.1} parent=1 // pred_region
      %84 = dma.done [#allocation3], 256
    $region37: #{tpu_custom_call.1} parent=1 // pred_fallthru
      _
    // Predicated region
    $region38: #{tpu_custom_call.1} parent=1 // pred_check
      _
    $region39: #{tpu_custom_call.1} parent=1 // pred_check_branch
      %86 = sbr.rel (0) target = $region41
    $region40: #{tpu_custom_call.1} parent=1 // pred_region
      %87 = dma.done [#allocation6], 128
    $region41: #{tpu_custom_call.1} parent=1 // pred_fallthru
      _
    // Predicated region
    $region42: #{tpu_custom_call.1} parent=1 // pred_check
      _
    $region43: #{tpu_custom_call.1} parent=1 // pred_check_branch
      %89 = sbr.rel (0) target = $region45
    $region44: #{tpu_custom_call.1} parent=1 // pred_region
      %90 = dma.done [#allocation6], 128
    $region45: #{tpu_custom_call.1} parent=1 // pred_fallthru
      _
    // Predicated region
    $region46: #{tpu_custom_call.1} parent=1 // pred_check
      _
    $region47: #{tpu_custom_call.1} parent=1 // pred_check_branch
      %92 = sbr.rel (0) target = $region49
    $region48: #{tpu_custom_call.1} parent=1 // pred_region
      %93 = dma.done [#allocation9], 512
    $region49: #{tpu_custom_call.1} parent=1 // pred_fallthru
      _
    // Predicated region
    $region50: #{tpu_custom_call.1} parent=1 // pred_check
      _
    $region51: #{tpu_custom_call.1} parent=1 // pred_check_branch
      %95 = sbr.rel (0) target = $region53
    $region52: #{tpu_custom_call.1} parent=1 // pred_region
      %96 = dma.done [#allocation9], 2048
    $region53: #{tpu_custom_call.1} parent=1 // pred_fallthru
      _
    %v97 = vld [vmem:[#allocation2] sm:$0xff]
    %v98 = vld [vmem:[#allocation2 + $0x8] sm:$0xff]
    %v99 = vld [vmem:[#allocation8] sm:$0xff]
    %v100 = vld [vmem:[#allocation8 + $0x8] sm:$0xff]
    %v101 = vld [vmem:[#allocation8 + $0x10] sm:$0xff]
    %v102 = vld [vmem:[#allocation8 + $0x18] sm:$0xff]
    %v103 = vld [vmem:[%s4] sm:$0x1]
    %v105 = vlaneseq
    %v106 = vshrl.u32 %v105, 7
    %v107 = vsub.s32 0, %v106
    %v108 = vrot.slane %v103, %v107
    %vm110 = vcmask 261120
    %v112 = vsel %vm110, %v97, 0
    %v115 = vsel %vm110, %v98, 0
    %117 = vmatprep.subr.mxu0 0.0
    %118 = vmatpush1.msra.mxu0 %v99
    %119 = vmatprep.subr.mxu0 0.0
    %120 = vmatpush1.msra.mxu0 %v100
    %121 = vmatprep.subr.mxu0 0.0
    %122 = vmatpush1.msra.mxu0 %v101
    %123 = vmatprep.subr.mxu0 0.0
    %124 = vmatpush1.msra.mxu0 %v102
    %125 = vmatprep.subr.mxu0 0.0
    %126 = vmatpush1.msra.mxu0 0.0
    %127 = vmatprep.subr.mxu0 0.0
    %128 = vmatpush1.msra.mxu0 0.0
    %129 = vmatprep.subr.mxu0 0.0
    %130 = vmatpush1.msra.mxu0 0.0
    %131 = vmatprep.subr.mxu0 0.0
    %132 = vmatpush1.msra.mxu0 0.0
    %133 = vmatprep.subr.mxu0 0.0
    %134 = vmatpush1.msra.mxu0 0.0
    %135 = vmatprep.subr.mxu0 0.0
    %136 = vmatpush1.msra.mxu0 0.0
    %137 = vmatprep.subr.mxu0 0.0
    %138 = vmatpush1.msra.mxu0 0.0
    %139 = vmatprep.subr.mxu0 0.0
    %140 = vmatpush1.msra.mxu0 0.0
    %141 = vmatprep.subr.mxu0 0.0
    %142 = vmatpush1.msra.mxu0 0.0
    %143 = vmatprep.subr.mxu0 0.0
    %144 = vmatpush1.msra.mxu0 0.0
    %145 = vmatprep.subr.mxu0 0.0
    %146 = vmatpush1.msra.mxu0 0.0
    %147 = vmatprep.subr.mxu0 0.0
    %148 = vmatpush1.msra.mxu0 0.0
    %149 = vmatprep.subr.mxu0 0.0
    %150 = vmatpush1.msra.mxu0 0.0
    %151 = vmatprep.subr.mxu0 0.0
    %152 = vmatpush1.msra.mxu0 0.0
    %153 = vmatprep.subr.mxu0 0.0
    %154 = vmatpush1.msra.mxu0 0.0
    %155 = vmatprep.subr.mxu0 0.0
    %156 = vmatpush1.msra.mxu0 0.0
    %157 = vmatprep.subr.mxu0 0.0
    %158 = vmatpush1.msra.mxu0 0.0
    %159 = vmatprep.subr.mxu0 0.0
    %160 = vmatpush1.msra.mxu0 0.0
    %161 = vmatprep.subr.mxu0 0.0
    %162 = vmatpush1.msra.mxu0 0.0
    %163 = vmatprep.subr.mxu0 0.0
    %164 = vmatpush1.msra.mxu0 0.0
    %165 = vmatprep.subr.mxu0 0.0
    %166 = vmatpush1.msra.mxu0 0.0
    %167 = vmatprep.subr.mxu0 0.0
    %168 = vmatpush1.msra.mxu0 0.0
    %169 = vmatprep.subr.mxu0 0.0
    %170 = vmatpush1.msra.mxu0 0.0
    %171 = vmatprep.subr.mxu0 0.0
    %172 = vmatpush1.msra.mxu0 0.0
    %173 = vmatprep.subr.mxu0 0.0
    %174 = vmatpush1.msra.mxu0 0.0
    %175 = vmatprep.subr.mxu0 0.0
    %176 = vmatpush1.msra.mxu0 0.0
    %177 = vmatprep.subr.mxu0 0.0
    %178 = vmatpush1.msra.mxu0 0.0
    %179 = vmatprep.subr.mxu0 0.0
    %180 = vmatpush1.msra.mxu0 0.0
    %181 = vmatprep.mubr.f32.mxu0 0.0
    %182 = vmatmul.mubr.f32.gmra.mrb[0].mxu0 %v112
    %v183 = vpop.f32.mrb[0].mxu0
    %v184 = vadd.f32 %v108, %v183
    %v185 = vpop.f32.mrb[0].mxu0
    %186 = vmatprep.mubr.f32.mxu0 0.0
    %187 = vmatmul.mubr.f32.gmra.mrb[0].mxu0 %v115
    %v188 = vpop.f32.mrb[0].mxu0
    %v189 = vadd.f32 %v108, %v188
    %v190 = vpop.f32.mrb[0].mxu0
    %191 = vdwg.mxu0
    %192 = vst [vmem:[#allocation11] sm:$0xff] %v184
    %193 = vst [vmem:[#allocation11 + $0x8] sm:$0xff] %v189
    %v194 = vld [vmem:[#allocation5] sm:$0xff]
    %v195 = vld [vmem:[#allocation10] sm:$0xff]
    %v196 = vld [vmem:[#allocation10 + $0x8] sm:$0xff]
    %v197 = vld [vmem:[#allocation10 + $0x10] sm:$0xff]
    %v198 = vld [vmem:[#allocation10 + $0x18] sm:$0xff]
    %v199 = vld [vmem:[#allocation10 + $0x20] sm:$0xff]
    %v200 = vld [vmem:[#allocation10 + $0x28] sm:$0xff]
    %v201 = vld [vmem:[#allocation10 + $0x30] sm:$0xff]
    %v202 = vld [vmem:[#allocation10 + $0x38] sm:$0xff]
    %v203 = vld [vmem:[#allocation10 + $0x40] sm:$0xff]
    %v204 = vld [vmem:[#allocation10 + $0x48] sm:$0xff]
    %v205 = vld [vmem:[#allocation10 + $0x50] sm:$0xff]
    %v206 = vld [vmem:[#allocation10 + $0x58] sm:$0xff]
    %v207 = vld [vmem:[#allocation10 + $0x60] sm:$0xff]
    %v208 = vld [vmem:[#allocation10 + $0x68] sm:$0xff]
    %v209 = vld [vmem:[#allocation10 + $0x70] sm:$0xff]
    %v210 = vld [vmem:[#allocation10 + $0x78] sm:$0xff]
    %v211 = vld [vmem:[#allocation7] sm:$0xff]
    %v212 = vld [vmem:[%s6] sm:$0xff]
    %v213 = vld [vmem:[%s6 + $0x8] sm:$0xf]
    %vm214 = vcmask 97280
    %v216 = vsel %vm214, %v211, 0
    %vm218 = vcmask 1043456
    %v220 = vsel %vm218, %v213, 0
    %222 = vmatprep.subr.mxu0 0.0
    %223 = vmatpush1.msra.mxu0 %v212
    %224 = vmatprep.subr.mxu0 0.0
    %225 = vmatpush1.msra.mxu0 %v220
    %226 = vmatprep.subr.mxu0 0.0
    %227 = vmatpush1.msra.mxu0 0.0
    %228 = vmatprep.subr.mxu0 0.0
    %229 = vmatpush1.msra.mxu0 0.0
    %230 = vmatprep.subr.mxu0 0.0
    %231 = vmatpush1.msra.mxu0 0.0
    %232 = vmatprep.subr.mxu0 0.0
    %233 = vmatpush1.msra.mxu0 0.0
    %234 = vmatprep.subr.mxu0 0.0
    %235 = vmatpush1.msra.mxu0 0.0
    %236 = vmatprep.subr.mxu0 0.0
    %237 = vmatpush1.msra.mxu0 0.0
    %238 = vmatprep.subr.mxu0 0.0
    %239 = vmatpush1.msra.mxu0 0.0
    %240 = vmatprep.subr.mxu0 0.0
    %241 = vmatpush1.msra.mxu0 0.0
    %242 = vmatprep.subr.mxu0 0.0
    %243 = vmatpush1.msra.mxu0 0.0
    %244 = vmatprep.subr.mxu0 0.0
    %245 = vmatpush1.msra.mxu0 0.0
    %246 = vmatprep.subr.mxu0 0.0
    %247 = vmatpush1.msra.mxu0 0.0
    %248 = vmatprep.subr.mxu0 0.0
    %249 = vmatpush1.msra.mxu0 0.0
    %250 = vmatprep.subr.mxu0 0.0
    %251 = vmatpush1.msra.mxu0 0.0
    %252 = vmatprep.subr.mxu0 0.0
    %253 = vmatpush1.msra.mxu0 0.0
    %254 = vmatprep.subr.mxu0 0.0
    %255 = vmatpush1.msra.mxu0 0.0
    %256 = vmatprep.subr.mxu0 0.0
    %257 = vmatpush1.msra.mxu0 0.0
    %258 = vmatprep.subr.mxu0 0.0
    %259 = vmatpush1.msra.mxu0 0.0
    %260 = vmatprep.subr.mxu0 0.0
    %261 = vmatpush1.msra.mxu0 0.0
    %262 = vmatprep.subr.mxu0 0.0
    %263 = vmatpush1.msra.mxu0 0.0
    %264 = vmatprep.subr.mxu0 0.0
    %265 = vmatpush1.msra.mxu0 0.0
    %266 = vmatprep.subr.mxu0 0.0
    %267 = vmatpush1.msra.mxu0 0.0
    %268 = vmatprep.subr.mxu0 0.0
    %269 = vmatpush1.msra.mxu0 0.0
    %270 = vmatprep.subr.mxu0 0.0
    %271 = vmatpush1.msra.mxu0 0.0
    %272 = vmatprep.subr.mxu0 0.0
    %273 = vmatpush1.msra.mxu0 0.0
    %274 = vmatprep.subr.mxu0 0.0
    %275 = vmatpush1.msra.mxu0 0.0
    %276 = vmatprep.subr.mxu0 0.0
    %277 = vmatpush1.msra.mxu0 0.0
    %278 = vmatprep.subr.mxu0 0.0
    %279 = vmatpush1.msra.mxu0 0.0
    %280 = vmatprep.subr.mxu0 0.0
    %281 = vmatpush1.msra.mxu0 0.0
    %282 = vmatprep.subr.mxu0 0.0
    %283 = vmatpush1.msra.mxu0 0.0
    %284 = vmatprep.subr.mxu0 0.0
    %285 = vmatpush1.msra.mxu0 0.0
    %286 = vmatprep.mubr.f32.mxu0 0.0
    %287 = vmatmul.mubr.f32.gmra.mrb[0].mxu0 %v216
    %v288 = vpop.f32.mrb[0].mxu0
    %v289 = vadd.f32 0.0, %v288
    %v290 = vpop.f32.mrb[0].mxu0
    %291 = vdwg.mxu0
    %292 = vmatprep.subr.mxu0 0.0
    %293 = vmatpush1.msra.mxu0 %v195
    %294 = vmatprep.subr.mxu0 0.0
    %295 = vmatpush1.msra.mxu0 %v196
    %296 = vmatprep.subr.mxu0 0.0
    %297 = vmatpush1.msra.mxu0 %v197
    %298 = vmatprep.subr.mxu0 0.0
    %299 = vmatpush1.msra.mxu0 %v198
    %300 = vmatprep.subr.mxu0 0.0
    %301 = vmatpush1.msra.mxu0 %v199
    %302 = vmatprep.subr.mxu0 0.0
    %303 = vmatpush1.msra.mxu0 %v200
    %304 = vmatprep.subr.mxu0 0.0
    %305 = vmatpush1.msra.mxu0 %v201
    %306 = vmatprep.subr.mxu0 0.0
    %307 = vmatpush1.msra.mxu0 %v202
    %308 = vmatprep.subr.mxu0 0.0
    %309 = vmatpush1.msra.mxu0 %v203
    %310 = vmatprep.subr.mxu0 0.0
    %311 = vmatpush1.msra.mxu0 %v204
    %312 = vmatprep.subr.mxu0 0.0
    %313 = vmatpush1.msra.mxu0 %v205
    %314 = vmatprep.subr.mxu0 0.0
    %315 = vmatpush1.msra.mxu0 %v206
    %316 = vmatprep.subr.mxu0 0.0
    %317 = vmatpush1.msra.mxu0 %v207
    %318 = vmatprep.subr.mxu0 0.0
    %319 = vmatpush1.msra.mxu0 %v208
    %320 = vmatprep.subr.mxu0 0.0
    %321 = vmatpush1.msra.mxu0 %v209
    %322 = vmatprep.subr.mxu0 0.0
    %323 = vmatpush1.msra.mxu0 %v210
    %324 = vmatprep.subr.mxu0 0.0
    %325 = vmatpush1.msra.mxu0 0.0
    %326 = vmatprep.subr.mxu0 0.0
    %327 = vmatpush1.msra.mxu0 0.0
    %328 = vmatprep.subr.mxu0 0.0
    %329 = vmatpush1.msra.mxu0 0.0
    %330 = vmatprep.subr.mxu0 0.0
    %331 = vmatpush1.msra.mxu0 0.0
    %332 = vmatprep.subr.mxu0 0.0
    %333 = vmatpush1.msra.mxu0 0.0
    %334 = vmatprep.subr.mxu0 0.0
    %335 = vmatpush1.msra.mxu0 0.0
    %336 = vmatprep.subr.mxu0 0.0
    %337 = vmatpush1.msra.mxu0 0.0
    %338 = vmatprep.subr.mxu0 0.0
    %339 = vmatpush1.msra.mxu0 0.0
    %340 = vmatprep.subr.mxu0 0.0
    %341 = vmatpush1.msra.mxu0 0.0
    %342 = vmatprep.subr.mxu0 0.0
    %343 = vmatpush1.msra.mxu0 0.0
    %344 = vmatprep.subr.mxu0 0.0
    %345 = vmatpush1.msra.mxu0 0.0
    %346 = vmatprep.subr.mxu0 0.0
    %347 = vmatpush1.msra.mxu0 0.0
    %348 = vmatprep.subr.mxu0 0.0
    %349 = vmatpush1.msra.mxu0 0.0
    %350 = vmatprep.subr.mxu0 0.0
    %351 = vmatpush1.msra.mxu0 0.0
    %352 = vmatprep.subr.mxu0 0.0
    %353 = vmatpush1.msra.mxu0 0.0
    %354 = vmatprep.subr.mxu0 0.0
    %355 = vmatpush1.msra.mxu0 0.0
    %356 = vmatprep.mubr.f32.mxu0 0.0
    %357 = vmatmul.mubr.f32.gmra.mrb[0].mxu0 %v194
    %v358 = vpop.f32.mrb[0].mxu0
    %v359 = vadd.f32 %v289, %v358
    %v360 = vpop.f32.mrb[0].mxu0
    %361 = vdwg.mxu0
    %v362 = vld [vmem:[%s7] sm:$0x1]
    %v364 = vlaneseq
    %v365 = vshrl.u32 %v364, 7
    %v366 = vsub.s32 0, %v365
    %v367 = vrot.slane %v362, %v366
    %v369 = vadd.f32 %v359, %v367
    %370 = vst [vmem:[#allocation12] sm:$0xff] %v369
    // Predicated region
    $region54: #{tpu_custom_call.1} parent=1 // pred_check
      _
    $region55: #{tpu_custom_call.1} parent=1 // pred_check_branch
      %372 = sbr.rel (0) target = $region57
    $region56: #{tpu_custom_call.1} parent=1 // pred_region
      %s374 = ssub.s32 256, 256
      %375 = vsyncadd [#allocation4], %s374
      %s376 = sshll.u32 [#allocation11], 4
      %s377 = int_to_ptr.vmem [resolvable:$true] %s376
      %382 = dma.vmem_to_hbm [thread:$0]  %s377, 256, %s8, [#allocation4], 128, 128, 8
    $region57: #{tpu_custom_call.1} parent=1 // pred_fallthru
      _
    // Predicated region
    $region58: #{tpu_custom_call.1} parent=1 // pred_check
      _
    $region59: #{tpu_custom_call.1} parent=1 // pred_check_branch
      %384 = sbr.rel (0) target = $region61
    $region60: #{tpu_custom_call.1} parent=1 // pred_region
      %s386 = ssub.s32 128, 128
      %387 = vsyncadd [#allocation13], %s386
      %s389 = sshll.u32 [#allocation12], 4
      %s390 = int_to_ptr.vmem [resolvable:$true] %s389
      %392 = dma.vmem_to_hbm [thread:$0]  %s390, 128, %s9, [#allocation13]
    $region61: #{tpu_custom_call.1} parent=1 // pred_fallthru
      _
    // Predicated region
    $region62: #{tpu_custom_call.1} parent=1 // pred_check
      _
    $region63: #{tpu_custom_call.1} parent=1 // pred_check_branch
      %394 = sbr.rel (0) target = $region65
    $region64: #{tpu_custom_call.1} parent=1 // pred_region
      %395 = dma.done [#allocation4], 256
    $region65: #{tpu_custom_call.1} parent=1 // pred_fallthru
      _
    // Predicated region
    $region66: #{tpu_custom_call.1} parent=1 // pred_check
      _
    $region67: #{tpu_custom_call.1} parent=1 // pred_check_branch
      %397 = sbr.rel (0) target = $region69
    $region68: #{tpu_custom_call.1} parent=1 // pred_region
      %398 = dma.done [#allocation13], 128
    $region69: #{tpu_custom_call.1} parent=1 // pred_fallthru
      _
    %399 = vsyncpa [#allocation3], 1
    %400 = vsyncpa [#allocation6], 1
    %401 = vsyncpa [#allocation9], 1
    %402 = vsyncpa [#allocation4], 1
    %403 = vsyncpa [#allocation13], 1

</llo_original>
